<compile_context>
chip_gen: v5e
topology: v5e:2x2
jax: 0.10.0
libtpu: 0.0.40
codegen_flags: <defaults>
</compile_context>

<pallas_src>
import jax
import jax.numpy as jnp
from jax.experimental import pallas as pl
from jax.experimental.pallas import tpu as pltpu

_LANES = 128


def _seg_metrics_kernel(logits_ref, gt_ref, inter_ref, union_ref):
    # logits_ref: (1, C, rows_tile, 128)  native logits dtype
    # gt_ref:     (1, rows_tile, 128)     int32 labels
    # inter_ref / union_ref: (1, rows_tile, 128) int32 accumulators, VMEM-resident
    #   across the HW (reduction) grid axis.
    j = pl.program_id(1)

    @pl.when(j == 0)
    def _():
        inter_ref[...] = jnp.zeros_like(inter_ref)
        union_ref[...] = jnp.zeros_like(union_ref)

    n_classes = logits_ref.shape[1]
    gt = gt_ref[0]

    # Channel argmax with first-occurrence tie-breaking (torch.argmax semantics).
    best = logits_ref[0, 0]
    pred = jnp.zeros(gt.shape, dtype=jnp.int32)
    for c in range(1, n_classes):
        v = logits_ref[0, c]
        take = v > best
        best = jnp.maximum(best, v)
        pred = jnp.where(take, jnp.int32(c), pred)

    # Bitwise AND / OR of the argmax index with labels, exactly as in the reference.
    # Accumulate in int32 (exact); convert to float only in the final scalar math.
    inter_ref[0] = inter_ref[0] + (pred & gt)
    union_ref[0] = union_ref[0] + (pred | gt)


def _choose_rows_tile(n_classes, logit_itemsize, rows):
    """Pick an HW tile (in 128-lane rows) that fits a conservative VMEM budget."""
    # Per-step footprint: double-buffered inputs (logits + gt) plus the two
    # resident int32 accumulators.
    budget = 12 * 1024 * 1024  # safe on v7x (64 MiB phys / 32 MiB scoped) and older gens
    per_row = _LANES * (2 * (n_classes * logit_itemsize + 4) + 2 * 4)
    rt = budget // per_row
    rt = max(16, min(int(rt), 2048))
    rt = (rt // 16) * 16  # multiple of 16: valid sublane tiling for f32 and bf16
    rows_padded_min = -(-rows // 16) * 16
    return max(16, min(rt, rows_padded_min))


def segmentation_metrics(output, gt):
    """output: (N, C, H, W) float logits (any float dtype), gt: (N, H, W) int labels."""
    N, C, H, W = output.shape
    HW = H * W
    itemsize = jnp.dtype(output.dtype).itemsize

    rows = -(-HW // _LANES)
    rows_tile = _choose_rows_tile(C, itemsize, rows)
    padded_rows = -(-rows // rows_tile) * rows_tile
    padded_hw = padded_rows * _LANES
    num_hw_tiles = padded_rows // rows_tile

    logits = output.reshape(N, C, HW)                 # keep native dtype (no f32 upcast)
    gt_flat = gt.astype(jnp.int32).reshape(N, HW)
    if padded_hw != HW:
        # Zero padding => all-equal logits => pred=0 (first-occurrence tie), gt=0:
        # padded pixels contribute nothing to intersection/union.
        logits = jnp.pad(logits, ((0, 0), (0, 0), (0, padded_hw - HW)))
        gt_flat = jnp.pad(gt_flat, ((0, 0), (0, padded_hw - HW)))
    logits = logits.reshape(N, C, padded_rows, _LANES)
    gt_flat = gt_flat.reshape(N, padded_rows, _LANES)

    inter_t, union_t = pl.pallas_call(
        _seg_metrics_kernel,
        out_shape=(
            jax.ShapeDtypeStruct((N, rows_tile, _LANES), jnp.int32),
            jax.ShapeDtypeStruct((N, rows_tile, _LANES), jnp.int32),
        ),
        grid=(N, num_hw_tiles),
        in_specs=[
            pl.BlockSpec((1, C, rows_tile, _LANES), lambda n, j: (n, 0, j, 0)),
            pl.BlockSpec((1, rows_tile, _LANES), lambda n, j: (n, j, 0)),
        ],
        out_specs=(
            pl.BlockSpec((1, rows_tile, _LANES), lambda n, j: (n, 0, 0)),
            pl.BlockSpec((1, rows_tile, _LANES), lambda n, j: (n, 0, 0)),
        ),
        compiler_params=pltpu.CompilerParams(
            dimension_semantics=("parallel", "arbitrary"),
            vmem_limit_bytes=32 * 1024 * 1024,
        ),
    )(logits, gt_flat)

    # Tiny final reduction + scalar math in JAX glue (exact int sums, then float).
    e = 1e-6
    inter = inter_t.sum(axis=(1, 2)).astype(jnp.float32) + e
    union = union_t.sum(axis=(1, 2)).astype(jnp.float32) + e
    dice = jnp.mean(2.0 * inter / (inter + union))
    iou = jnp.mean(inter / union)
    return {"iou": iou, "dice": dice}


def _reference(output, gt):
    # Pure-JAX reference mirroring the PyTorch module.
    # NOTE: as in the PyTorch spec, intersection/union are *bitwise* ops on the
    # raw argmax index, which is only a true IoU/Dice for binary segmentation.
    pred = jnp.argmax(output, axis=1).astype(jnp.int32)
    gt = gt.astype(jnp.int32)
    e = 1e-6
    inter = jnp.sum((pred & gt).astype(jnp.float32), axis=(-1, -2)) + e
    union = jnp.sum((pred | gt).astype(jnp.float32), axis=(-1, -2)) + e
    return {
        "iou": jnp.mean(inter / union),
        "dice": jnp.mean(2.0 * inter / (inter + union)),
    }


def _check(output, gt):
    results = segmentation_metrics(output, gt)
    results = jax.tree_util.tree_map(jax.block_until_ready, results)
    ref = _reference(output, gt)
    assert jnp.allclose(results["iou"], ref["iou"], atol=1e-5), (results, ref)
    assert jnp.allclose(results["dice"], ref["dice"], atol=1e-5), (results, ref)


if __name__ == "__main__":
    key = jax.random.PRNGKey(0)
    k1, k2, k3, k4 = jax.random.split(key, 4)

    # Primary test: f32 logits, binary labels, HW a multiple of 128.
    N, C, H, W = 2, 2, 16, 16
    output = jax.random.normal(k1, (N, C, H, W), dtype=jnp.float32)
    gt = jax.random.bernoulli(k2, 0.4, (N, H, W)).astype(jnp.int32)
    _check(output, gt)

    # Second test: bf16 logits streamed natively, C=4, HW not a multiple of the tile.
    N2, C2, H2, W2 = 2, 4, 16, 24
    output2 = jax.random.normal(k3, (N2, C2, H2, W2), dtype=jnp.bfloat16)
    gt2 = jax.random.bernoulli(k4, 0.5, (N2, H2, W2)).astype(jnp.int32)
    _check(output2, gt2)

    print("KERNEL_OK")
</pallas_src>

<mosaic_0001>
module attributes {stable_mosaic.version = 11 : i64} {
  func.func @_seg_metrics_kernel(%arg0: i32, %arg1: i32, %arg2: memref<1x2x16x128xf32, #tpu.memory_space<vmem>>, %arg3: memref<1x16x128xi32, #tpu.memory_space<vmem>>, %arg4: memref<1x16x128xi32, #tpu.memory_space<vmem>>, %arg5: memref<1x16x128xi32, #tpu.memory_space<vmem>>) attributes {dimension_semantics = [#tpu.dimension_semantics<parallel>, #tpu.dimension_semantics<arbitrary>], iteration_bounds = array<i64: 2, 1>, scalar_prefetch = 0 : i64, scratch_operands = 0 : i64, tpu.core_type = #tpu.core_type<tc>, window_params = [{transform_indices = @transform_0, window_bounds = array<i64: 1, 2, 16, 128>}, {transform_indices = @transform_1, window_bounds = array<i64: 1, 16, 128>}, {transform_indices = @transform_2, window_bounds = array<i64: 1, 16, 128>}, {transform_indices = @transform_3, window_bounds = array<i64: 1, 16, 128>}]} {
    %c0_i32 = arith.constant 0 : i32
    %0 = arith.cmpi eq, %arg1, %c0_i32 : i32
    %1 = arith.extui %0 : i1 to i32
    %c0_i32_0 = arith.constant 0 : i32
    %2 = arith.cmpi ne, %1, %c0_i32_0 : i32
    scf.if %2 {
      %c0_i32_23 = arith.constant 0 : i32
      %27 = vector.broadcast %c0_i32_23 : i32 to vector<1x16x128xi32>
      %c0_24 = arith.constant 0 : index
      %c0_25 = arith.constant 0 : index
      %c0_26 = arith.constant 0 : index
      %28 = vector.load %arg4[%c0_24, %c0_25, %c0_26] : memref<1x16x128xi32, #tpu.memory_space<vmem>>, vector<1x16x128xi32>
      tpu.vector_store %arg4[%c0_24, %c0_25, %c0_26], %27 {strides = array<i32>} : memref<1x16x128xi32, #tpu.memory_space<vmem>>, vector<1x16x128xi32>,
      %c0_i32_27 = arith.constant 0 : i32
      %29 = vector.broadcast %c0_i32_27 : i32 to vector<1x16x128xi32>
      %c0_28 = arith.constant 0 : index
      %c0_29 = arith.constant 0 : index
      %c0_30 = arith.constant 0 : index
      %30 = vector.load %arg5[%c0_28, %c0_29, %c0_30] : memref<1x16x128xi32, #tpu.memory_space<vmem>>, vector<1x16x128xi32>
      tpu.vector_store %arg5[%c0_28, %c0_29, %c0_30], %29 {strides = array<i32>} : memref<1x16x128xi32, #tpu.memory_space<vmem>>, vector<1x16x128xi32>,
    } else {
    }
    %c0 = arith.constant 0 : index
    %c0_1 = arith.constant 0 : index
    %c0_2 = arith.constant 0 : index
    %3 = vector.load %arg3[%c0, %c0_1, %c0_2] : memref<1x16x128xi32, #tpu.memory_space<vmem>>, vector<1x16x128xi32>
    %4 = vector.shape_cast %3 : vector<1x16x128xi32> to vector<16x128xi32>
    %c0_3 = arith.constant 0 : index
    %c0_4 = arith.constant 0 : index
    %c0_5 = arith.constant 0 : index
    %c0_6 = arith.constant 0 : index
    %5 = vector.load %arg2[%c0_3, %c0_4, %c0_5, %c0_6] : memref<1x2x16x128xf32, #tpu.memory_space<vmem>>, vector<1x1x16x128xf32>
    %6 = vector.shape_cast %5 : vector<1x1x16x128xf32> to vector<16x128xf32>
    %c0_i32_7 = arith.constant 0 : i32
    %7 = vector.broadcast %c0_i32_7 : i32 to vector<16x128xi32>
    %c0_8 = arith.constant 0 : index
    %c1 = arith.constant 1 : index
    %c0_9 = arith.constant 0 : index
    %c0_10 = arith.constant 0 : index
    %8 = vector.load %arg2[%c0_8, %c1, %c0_9, %c0_10] : memref<1x2x16x128xf32, #tpu.memory_space<vmem>>, vector<1x1x16x128xf32>
    %9 = vector.shape_cast %8 : vector<1x1x16x128xf32> to vector<16x128xf32>
    %10 = arith.cmpf ogt, %9, %6 : vector<16x128xf32>
    %c1_i32 = arith.constant 1 : i32
    %11 = vector.broadcast %c1_i32 : i32 to vector<16x128xi32>
    %12 = arith.select %10, %11, %7 : vector<16x128xi1>, vector<16x128xi32>
    %c0_11 = arith.constant 0 : index
    %c0_12 = arith.constant 0 : index
    %c0_13 = arith.constant 0 : index
    %13 = vector.load %arg4[%c0_11, %c0_12, %c0_13] : memref<1x16x128xi32, #tpu.memory_space<vmem>>, vector<1x16x128xi32>
    %14 = vector.shape_cast %13 : vector<1x16x128xi32> to vector<16x128xi32>
    %15 = arith.andi %12, %4 : vector<16x128xi32>
    %16 = arith.addi %14, %15 : vector<16x128xi32>
    %c0_14 = arith.constant 0 : index
    %c0_15 = arith.constant 0 : index
    %c0_16 = arith.constant 0 : index
    %17 = vector.load %arg4[%c0_14, %c0_15, %c0_16] : memref<1x16x128xi32, #tpu.memory_space<vmem>>, vector<1x16x128xi32>
    %18 = vector.shape_cast %17 : vector<1x16x128xi32> to vector<16x128xi32>
    %19 = vector.shape_cast %16 : vector<16x128xi32> to vector<1x16x128xi32>
    tpu.vector_store %arg4[%c0_14, %c0_15, %c0_16], %19 {strides = array<i32>} : memref<1x16x128xi32, #tpu.memory_space<vmem>>, vector<1x16x128xi32>,
    %c0_17 = arith.constant 0 : index
    %c0_18 = arith.constant 0 : index
    %c0_19 = arith.constant 0 : index
    %20 = vector.load %arg5[%c0_17, %c0_18, %c0_19] : memref<1x16x128xi32, #tpu.memory_space<vmem>>, vector<1x16x128xi32>
    %21 = vector.shape_cast %20 : vector<1x16x128xi32> to vector<16x128xi32>
    %22 = arith.ori %12, %4 : vector<16x128xi32>
    %23 = arith.addi %21, %22 : vector<16x128xi32>
    %c0_20 = arith.constant 0 : index
    %c0_21 = arith.constant 0 : index
    %c0_22 = arith.constant 0 : index
    %24 = vector.load %arg5[%c0_20, %c0_21, %c0_22] : memref<1x16x128xi32, #tpu.memory_space<vmem>>, vector<1x16x128xi32>
    %25 = vector.shape_cast %24 : vector<1x16x128xi32> to vector<16x128xi32>
    %26 = vector.shape_cast %23 : vector<16x128xi32> to vector<1x16x128xi32>
    tpu.vector_store %arg5[%c0_20, %c0_21, %c0_22], %26 {strides = array<i32>} : memref<1x16x128xi32, #tpu.memory_space<vmem>>, vector<1x16x128xi32>,
    return
  }
  func.func @transform_0(%arg0: i32, %arg1: i32) -> (i32, i32, i32, i32) {
    %c0_i32 = arith.constant 0 : i32
    %c0_i32_0 = arith.constant 0 : i32
    %c0_i32_1 = arith.constant 0 : i32
    return %arg0, %c0_i32, %arg1, %c0_i32_0 : i32, i32, i32, i32
  }
  func.func @transform_1(%arg0: i32, %arg1: i32) -> (i32, i32, i32) {
    %c0_i32 = arith.constant 0 : i32
    %c0_i32_0 = arith.constant 0 : i32
    return %arg0, %arg1, %c0_i32 : i32, i32, i32
  }
  func.func @transform_2(%arg0: i32, %arg1: i32) -> (i32, i32, i32) {
    %c0_i32 = arith.constant 0 : i32
    %c0_i32_0 = arith.constant 0 : i32
    %c0_i32_1 = arith.constant 0 : i32
    return %arg0, %c0_i32, %c0_i32_0 : i32, i32, i32
  }
  func.func @transform_3(%arg0: i32, %arg1: i32) -> (i32, i32, i32) {
    %c0_i32 = arith.constant 0 : i32
    %c0_i32_0 = arith.constant 0 : i32
    %c0_i32_1 = arith.constant 0 : i32
    return %arg0, %c0_i32, %c0_i32_0 : i32, i32, i32
  }
}

</mosaic_0001>

<llo_original>
// kernel: tpu_custom_call.1
$region0: #{tpu_custom_call.1}
  #allocation0 [shape = 'u32[]', space=smem, size = 0x4, offset = 0x4, fixed_abs, tag = 'smem constant byte address 0x4 - core index']
  #allocation1 [shape = 'u32[72,128]{1,0:T(1,128)}', space=vmem, size = 0x9000, scoped, tag = 'internal scratch']
  %s0 = inlined_call_operand.hbm [shape: f32[2,2,16,128], index: 0, kind: input, shape index: {}]
  %s1 = inlined_call_operand.hbm [shape: s32[2,16,128], index: 1, kind: input, shape index: {}]
  %s2 = inlined_call_operand.hbm [shape: s32[2,16,128], index: 2, kind: output, shape index: {0}]
  %s3 = inlined_call_operand.hbm [shape: s32[2,16,128], index: 3, kind: output, shape index: {1}]
  %4 = xla_tuple %s2, %s3
  %s5 = sld [smem:[#allocation0]]
  $region61: #{tpu_custom_call.1} parent=0
    _
  %s7 = ssub.s32 1, %s5
  %s8 = scalar_select 0, %s7, %s5
  $region1: #{tpu_custom_call.1} parent=0
    #allocation2 [shape = 'u8[32768]{0}', space=vmem, size = 0x8000, scoped, tag = 'input window, operand 0']
    #allocation3 [shape = 's32[2]{0}', space=sflag, size = 0x8, scoped, tag = 'scoped memory for tpu_custom_call.1']
    #allocation4 [shape = 's32[2]{0}', space=sflag, size = 0x8, scoped, tag = 'scoped memory for tpu_custom_call.1']
    #allocation5 [shape = 'u8[16384]{0}', space=vmem, size = 0x4000, scoped, tag = 'input window, operand 1']
    #allocation6 [shape = 's32[2]{0}', space=sflag, size = 0x8, scoped, tag = 'scoped memory for tpu_custom_call.1']
    #allocation7 [shape = 'u8[16384]{0}', space=vmem, size = 0x4000, scoped, tag = 'output window, operand 0']
    #allocation8 [shape = 'u8[16384]{0}', space=vmem, size = 0x4000, scoped, tag = 'output window, operand 1']
    #allocation9 [shape = 's32[2]{0}', space=sflag, size = 0x8, scoped, tag = 'scoped memory for tpu_custom_call.1']
    %9 = vsyncpa [#allocation3], 0
    %s10 = scalar_lea.sflag [#allocation3], 1
    %11 = vsyncpa %s10, 0
    %12 = vsyncpa [#allocation6], 0
    %s13 = scalar_lea.sflag [#allocation6], 1
    %14 = vsyncpa %s13, 0
    %15 = vsyncpa [#allocation4], 0
    %s16 = scalar_lea.sflag [#allocation4], 1
    %17 = vsyncpa %s16, 0
    %18 = vsyncpa [#allocation9], 0
    %s19 = scalar_lea.sflag [#allocation9], 1
    %20 = vsyncpa %s19, 0
    loop: start=0, step=1, limit=4
    $region2: #{tpu_custom_call.1} parent=1 // loop_pre_header
      _
    $region3: #{tpu_custom_call.1} parent=1 // loop_header
      %s22 = sphi 0, %s26
      %p23 = scmp.ge.s32.totalorder %s22, 4
      %s29 = sphi 0, %s41
      %s30 = sphi 0, %s37
      %s31 = sphi 0, %s29
      %s32 = sphi 0, %s30
      %s33 = sphi 0, %s31
      %s34 = sphi 0, %s32
      %s46 = sphi 0, %s48
      %s49 = sphi 0, %s46
      %s50 = sphi 0, %s49
      %s66 = sphi 0, %s50
      %s74 = sphi 0, %s76
      %s77 = sphi 0, %s74
      %s78 = sphi 0, %s77
      %s94 = sphi 0, %s78
      %s100 = sphi 0, %s102
      %s103 = sphi 0, %s100
      %s104 = sphi 0, %s103
      %s120 = sphi 0, %s104
      %s126 = sphi 0, %s128
      %s129 = sphi 0, %s126
      %s130 = sphi 0, %s129
      %s146 = sphi 0, %s130
    $region4: #{tpu_custom_call.1} parent=1 // loop_header_branch
      %25 = sbr.rel (%p23) target = $region8
    $region5: #{tpu_custom_call.1} parent=1 // loop_body
      %s27 = ssub.s32 %s22, 1
      %s28 = ssub.s32 %s22, 2
      %s35 = sadd.s32 1, %s30
      %p36 = scmp.ge.s32.totalorder %s35, 1
      %s37 = scalar_select %p36, 0, %s35
      %s38 = sadd.s32 1, %s29
      %s39 = scalar_select %p36, %s38, %s29
      %p40 = scmp.ge.s32.totalorder %s39, 2
      %s41 = scalar_select %p40, 0, %s39
      %s42 = ssub.s32 %s29, %s41
      %s43 = ssub.s32 %s30, %s37
      %s44 = sor.u32 %s42, %s43
      %p45 = scmp.eq.s32.totalorder %s44, 0
      %s47 = sadd.s32 %s46, 1
      %s48 = scalar_select %p45, %s46, %s47
      %p51 = pneg %p45
      %p52 = scmp.eq.s32.totalorder %s22, 1
      %p53 = por %p51, %p52
      %p54 = scmp.ne.s32.totalorder %s46, %s49
      %p55 = scmp.eq.s32.totalorder %s22, 0
      %p56 = por %p54, %p55
      %p57 = scmp.ne.s32.totalorder %s46, %s49
      %p58 = scmp.eq.s32.totalorder %s27, 1
      %p59 = por %p57, %p58
      %p60 = scmp.ne.s32.totalorder %s49, %s50
      %p61 = scmp.eq.s32.totalorder %s27, 0
      %p62 = por %p60, %p61
      %p63 = scmp.ne.s32.totalorder %s49, %s50
      %p64 = scmp.eq.s32.totalorder %s28, 1
      %p65 = por %p63, %p64
      %p67 = scmp.ne.s32.totalorder %s50, %s66
      %p68 = scmp.eq.s32.totalorder %s28, 0
      %p69 = por %p67, %p68
      %s70 = ssub.s32 %s29, %s41
      %s71 = ssub.s32 %s30, %s37
      %s72 = sor.u32 %s70, %s71
      %p73 = scmp.eq.s32.totalorder %s72, 0
      %s75 = sadd.s32 %s74, 1
      %s76 = scalar_select %p73, %s74, %s75
      %p79 = pneg %p73
      %p80 = scmp.eq.s32.totalorder %s22, 1
      %p81 = por %p79, %p80
      %p82 = scmp.ne.s32.totalorder %s74, %s77
      %p83 = scmp.eq.s32.totalorder %s22, 0
      %p84 = por %p82, %p83
      %p85 = scmp.ne.s32.totalorder %s74, %s77
      %p86 = scmp.eq.s32.totalorder %s27, 1
      %p87 = por %p85, %p86
      %p88 = scmp.ne.s32.totalorder %s77, %s78
      %p89 = scmp.eq.s32.totalorder %s27, 0
      %p90 = por %p88, %p89
      %p91 = scmp.ne.s32.totalorder %s77, %s78
      %p92 = scmp.eq.s32.totalorder %s28, 1
      %p93 = por %p91, %p92
      %p95 = scmp.ne.s32.totalorder %s78, %s94
      %p96 = scmp.eq.s32.totalorder %s28, 0
      %p97 = por %p95, %p96
      %s98 = ssub.s32 %s29, %s41
      %p99 = scmp.eq.s32.totalorder %s98, 0
      %s101 = sadd.s32 %s100, 1
      %s102 = scalar_select %p99, %s100, %s101
      %p105 = pneg %p99
      %p106 = scmp.eq.s32.totalorder %s22, 1
      %p107 = por %p105, %p106
      %p108 = scmp.ne.s32.totalorder %s100, %s103
      %p109 = scmp.eq.s32.totalorder %s22, 0
      %p110 = por %p108, %p109
      %p111 = scmp.ne.s32.totalorder %s100, %s103
      %p112 = scmp.eq.s32.totalorder %s27, 1
      %p113 = por %p111, %p112
      %p114 = scmp.ne.s32.totalorder %s103, %s104
      %p115 = scmp.eq.s32.totalorder %s27, 0
      %p116 = por %p114, %p115
      %p117 = scmp.ne.s32.totalorder %s103, %s104
      %p118 = scmp.eq.s32.totalorder %s28, 1
      %p119 = por %p117, %p118
      %p121 = scmp.ne.s32.totalorder %s104, %s120
      %p122 = scmp.eq.s32.totalorder %s28, 0
      %p123 = por %p121, %p122
      %s124 = ssub.s32 %s29, %s41
      %p125 = scmp.eq.s32.totalorder %s124, 0
      %s127 = sadd.s32 %s126, 1
      %s128 = scalar_select %p125, %s126, %s127
      %p131 = pneg %p125
      %p132 = scmp.eq.s32.totalorder %s22, 1
      %p133 = por %p131, %p132
      %p134 = scmp.ne.s32.totalorder %s126, %s129
      %p135 = scmp.eq.s32.totalorder %s22, 0
      %p136 = por %p134, %p135
      %p137 = scmp.ne.s32.totalorder %s126, %s129
      %p138 = scmp.eq.s32.totalorder %s27, 1
      %p139 = por %p137, %p138
      %p140 = scmp.ne.s32.totalorder %s129, %s130
      %p141 = scmp.eq.s32.totalorder %s27, 0
      %p142 = por %p140, %p141
      %p143 = scmp.ne.s32.totalorder %s129, %s130
      %p144 = scmp.eq.s32.totalorder %s28, 1
      %p145 = por %p143, %p144
      %p147 = scmp.ne.s32.totalorder %s130, %s146
      %p148 = scmp.eq.s32.totalorder %s28, 0
      %p149 = por %p147, %p148
      %p150 = scmp.le.s32.totalorder 1, %s22
      %p151 = scmp.lt.s32.totalorder %s22, 3
      %p152 = pnand %p150, %p151
      %p153 = pneg %p152
      // Predicated region
      $region9: #{tpu_custom_call.1} parent=5 // pred_check
        _
      $region10: #{tpu_custom_call.1} parent=5 // pred_check_branch
        %155 = sbr.rel (%p152) target = $region12
      $region11: #{tpu_custom_call.1} parent=5 // pred_region
        %s156 = ssub.s32 %s22, 1
      $region12: #{tpu_custom_call.1} parent=5 // pred_fallthru
        _
      %p157 = scmp.lt.s32.totalorder %s22, 2
      // Predicated region
      $region13: #{tpu_custom_call.1} parent=5 // pred_check
        %p158 = pneg %p157
      $region14: #{tpu_custom_call.1} parent=5 // pred_check_branch
        %160 = sbr.rel (%p158) target = $region16
      $region15: #{tpu_custom_call.1} parent=5 // pred_region
        // Predicated region
        $region17: #{tpu_custom_call.1} parent=15 // pred_check
          %p161 = pneg %p56
        $region18: #{tpu_custom_call.1} parent=15 // pred_check_branch
          %163 = sbr.rel (%p161) target = $region20
        $region19: #{tpu_custom_call.1} parent=15 // pred_region
          %s164 = sand.u32 %s46, 1
          %s165 = scalar_lea.sflag [#allocation3], %s164
          %s166 = sand.u32 %s46, 1
          %s167 = smul.addr %s166, 32
          %s168 = scalar_lea.vmem [#allocation2], %s167
          %s169 = smul.u32 2, %s30
          %171 = vsyncadd %s165, 0
          %s172 = smul.addr %s29, 4
          %s173 = sadd.s32 %s169, %s172
          %s174 = smul.addr %s173, 8
          %s175 = scalar_lea.hbm %s0, %s174
          %s176 = sshll.u32 %s175, 4
          %s177 = int_to_ptr.hbm [resolvable:$true] %s176
          %s178 = sshll.u32 %s168, 4
          %s179 = int_to_ptr.vmem [resolvable:$true] %s178
          %184 = dma.hbm_to_vmem [thread:$0]  %s177, 512, %s179, %s165, 128, 128, 8
        $region20: #{tpu_custom_call.1} parent=15 // pred_fallthru
          _
        // Predicated region
        $region21: #{tpu_custom_call.1} parent=15 // pred_check
          %p185 = pneg %p84
        $region22: #{tpu_custom_call.1} parent=15 // pred_check_branch
          %187 = sbr.rel (%p185) target = $region24
        $region23: #{tpu_custom_call.1} parent=15 // pred_region
          %s188 = sand.u32 %s74, 1
          %s189 = scalar_lea.sflag [#allocation6], %s188
          %s190 = sand.u32 %s74, 1
          %s191 = smul.addr %s190, 16
          %s192 = scalar_lea.vmem [#allocation5], %s191
          %s193 = smul.u32 2, %s30
          %195 = vsyncadd %s189, 0
          %s196 = smul.addr %s29, 2
          %s197 = sadd.s32 %s193, %s196
          %s198 = smul.addr %s197, 8
          %s199 = scalar_lea.hbm %s1, %s198
          %s200 = sshll.u32 %s199, 4
          %s201 = int_to_ptr.hbm [resolvable:$true] %s200
          %s202 = sshll.u32 %s192, 4
          %s203 = int_to_ptr.vmem [resolvable:$true] %s202
          %208 = dma.hbm_to_vmem [thread:$0]  %s201, 256, %s203, %s189, 128, 128, 8
        $region24: #{tpu_custom_call.1} parent=15 // pred_fallthru
          _
      $region16: #{tpu_custom_call.1} parent=5 // pred_fallthru
        _
      %p209 = scmp.le.s32.totalorder 1, %s22
      %p210 = scmp.lt.s32.totalorder %s22, 3
      %p211 = pnand %p209, %p210
      %p212 = pneg %p211
      // Predicated region
      $region25: #{tpu_custom_call.1} parent=5 // pred_check
        _
      $region26: #{tpu_custom_call.1} parent=5 // pred_check_branch
        %214 = sbr.rel (%p211) target = $region28
      $region27: #{tpu_custom_call.1} parent=5 // pred_region
        %s215 = ssub.s32 %s22, 1
        %s216 = sand.u32 %s49, 1
        %s217 = scalar_lea.sflag [#allocation3], %s216
        %s218 = sand.u32 %s49, 1
        %s219 = smul.addr %s218, 32
        %s220 = scalar_lea.vmem [#allocation2], %s219
        // Predicated region
        $region29: #{tpu_custom_call.1} parent=27 // pred_check
          %p221 = pneg %p62
        $region30: #{tpu_custom_call.1} parent=27 // pred_check_branch
          %223 = sbr.rel (%p221) target = $region32
        $region31: #{tpu_custom_call.1} parent=27 // pred_region
          %225 = dma.done %s217, 512
        $region32: #{tpu_custom_call.1} parent=27 // pred_fallthru
          _
        %s226 = sand.u32 %s77, 1
        %s227 = scalar_lea.sflag [#allocation6], %s226
        %s228 = sand.u32 %s77, 1
        %s229 = smul.addr %s228, 16
        %s230 = scalar_lea.vmem [#allocation5], %s229
        // Predicated region
        $region33: #{tpu_custom_call.1} parent=27 // pred_check
          %p231 = pneg %p90
        $region34: #{tpu_custom_call.1} parent=27 // pred_check_branch
          %233 = sbr.rel (%p231) target = $region36
        $region35: #{tpu_custom_call.1} parent=27 // pred_region
          %235 = dma.done %s227, 256
        $region36: #{tpu_custom_call.1} parent=27 // pred_fallthru
          _
        %s236 = sand.u32 %s49, 1
        %s237 = scalar_lea.sflag [#allocation3], %s236
        %s238 = sand.u32 %s49, 1
        %s239 = smul.addr %s238, 32
        %s240 = scalar_lea.vmem [#allocation2], %s239
        %p241 = pneg %p62
        %p242 = pneg %p59
        %s243 = sand.u32 %s77, 1
        %s244 = scalar_lea.sflag [#allocation6], %s243
        %s245 = sand.u32 %s77, 1
        %s246 = smul.addr %s245, 16
        %s247 = scalar_lea.vmem [#allocation5], %s246
        %p248 = pneg %p90
        %p249 = pneg %p87
        %p250 = pneg %p116
        %p251 = pneg %p113
        %s252 = sand.u32 %s103, 1
        %s253 = scalar_lea.sflag [#allocation4], %s252
        %s254 = sand.u32 %s103, 1
        %s255 = smul.addr %s254, 16
        %s256 = scalar_lea.vmem [#allocation7], %s255
        %p257 = pneg %p142
        %p258 = pneg %p139
        %s259 = sand.u32 %s129, 1
        %s260 = scalar_lea.sflag [#allocation9], %s259
        %s261 = sand.u32 %s129, 1
        %s262 = smul.addr %s261, 16
        %s263 = scalar_lea.vmem [#allocation8], %s262
        %s264 = smul.u32 2, %s32
        %s265 = smul.u32 2, %s32
        %p266 = scmp.eq.s32.totalorder %s32, 0
        // Predicated region
        $region37: #{tpu_custom_call.1} parent=27 // pred_check
          %p267 = pneg %p266
        $region38: #{tpu_custom_call.1} parent=27 // pred_check_branch
          %269 = sbr.rel (%p267) target = $region40
        $region39: #{tpu_custom_call.1} parent=27 // pred_region
          %270 = vst [vmem:[%s256] sm:$0xff] 0
          %271 = vst [vmem:[%s256 + $0x8] sm:$0xff] 0
          %272 = vst [vmem:[%s263] sm:$0xff] 0
          %273 = vst [vmem:[%s263 + $0x8] sm:$0xff] 0
        $region40: #{tpu_custom_call.1} parent=27 // pred_fallthru
          _
        %v274 = vld [vmem:[%s230] sm:$0xff]
        %v275 = vld [vmem:[%s230 + $0x8] sm:$0xff]
        %v276 = vld [vmem:[%s220] sm:$0xff]
        %v277 = vld [vmem:[%s220 + $0x8] sm:$0xff]
        %s278 = scalar_lea.vmem %s220, 16 [#allocation2]
        %v279 = vld [vmem:[%s278] sm:$0xff]
        %v280 = vld [vmem:[%s278 + $0x8] sm:$0xff]
        %vm281 = vcmp.gt.f32.partialorder %v279, %v276
        %vm282 = vcmp.gt.f32.partialorder %v280, %v277
        %v283 = vsel %vm281, 1, 0
        %v284 = vsel %vm282, 1, 0
        %v285 = vld [vmem:[%s256] sm:$0xff]
        %v286 = vld [vmem:[%s256 + $0x8] sm:$0xff]
        %v287 = vand.u32 %v283, %v274
        %v288 = vand.u32 %v284, %v275
        %v289 = vadd.s32 %v285, %v287
        %v290 = vadd.s32 %v286, %v288
        %291 = vst [vmem:[%s256] sm:$0xff] %v289
        %292 = vst [vmem:[%s256 + $0x8] sm:$0xff] %v290
        %v293 = vld [vmem:[%s263] sm:$0xff]
        %v294 = vld [vmem:[%s263 + $0x8] sm:$0xff]
        %v295 = vor.u32 %v283, %v274
        %v296 = vor.u32 %v284, %v275
        %v297 = vadd.s32 %v293, %v295
        %v298 = vadd.s32 %v294, %v296
        %299 = vst [vmem:[%s263] sm:$0xff] %v297
        %300 = vst [vmem:[%s263 + $0x8] sm:$0xff] %v298
        %s301 = sand.u32 %s103, 1
        %s302 = scalar_lea.sflag [#allocation4], %s301
        %s303 = sand.u32 %s103, 1
        %s304 = smul.addr %s303, 16
        %s305 = scalar_lea.vmem [#allocation7], %s304
        %s306 = sand.u32 %s129, 1
        %s307 = scalar_lea.sflag [#allocation9], %s306
        %s308 = sand.u32 %s129, 1
        %s309 = smul.addr %s308, 16
        %s310 = scalar_lea.vmem [#allocation8], %s309
        // Predicated region
        $region41: #{tpu_custom_call.1} parent=27 // pred_check
          %p311 = pneg %p113
        $region42: #{tpu_custom_call.1} parent=27 // pred_check_branch
          %313 = sbr.rel (%p311) target = $region44
        $region43: #{tpu_custom_call.1} parent=27 // pred_region
          %315 = vsyncadd %s302, 0
          %s316 = smul.addr %s31, 2
          %s317 = smul.addr %s316, 8
          %s318 = scalar_lea.hbm %s2, %s317
          %s319 = sshll.u32 %s305, 4
          %s320 = int_to_ptr.vmem [resolvable:$true] %s319
          %s321 = sshll.u32 %s318, 4
          %s322 = int_to_ptr.hbm [resolvable:$true] %s321
          %327 = dma.vmem_to_hbm [thread:$0]  %s320, 256, %s322, %s302, 128, 128, 8
        $region44: #{tpu_custom_call.1} parent=27 // pred_fallthru
          _
        // Predicated region
        $region45: #{tpu_custom_call.1} parent=27 // pred_check
          %p328 = pneg %p139
        $region46: #{tpu_custom_call.1} parent=27 // pred_check_branch
          %330 = sbr.rel (%p328) target = $region48
        $region47: #{tpu_custom_call.1} parent=27 // pred_region
          %332 = vsyncadd %s307, 0
          %s333 = smul.addr %s31, 2
          %s334 = smul.addr %s333, 8
          %s335 = scalar_lea.hbm %s3, %s334
          %s336 = sshll.u32 %s310, 4
          %s337 = int_to_ptr.vmem [resolvable:$true] %s336
          %s338 = sshll.u32 %s335, 4
          %s339 = int_to_ptr.hbm [resolvable:$true] %s338
          %344 = dma.vmem_to_hbm [thread:$0]  %s337, 256, %s339, %s307, 128, 128, 8
        $region48: #{tpu_custom_call.1} parent=27 // pred_fallthru
          _
      $region28: #{tpu_custom_call.1} parent=5 // pred_fallthru
        _
      %p345 = scmp.le.s32.totalorder 2, %s22
      // Predicated region
      $region49: #{tpu_custom_call.1} parent=5 // pred_check
        %p346 = pneg %p345
      $region50: #{tpu_custom_call.1} parent=5 // pred_check_branch
        %348 = sbr.rel (%p346) target = $region52
      $region51: #{tpu_custom_call.1} parent=5 // pred_region
        %s349 = ssub.s32 %s22, 2
        // Predicated region
        $region53: #{tpu_custom_call.1} parent=51 // pred_check
          %p350 = pneg %p119
        $region54: #{tpu_custom_call.1} parent=51 // pred_check_branch
          %352 = sbr.rel (%p350) target = $region56
        $region55: #{tpu_custom_call.1} parent=51 // pred_region
          %s353 = sand.u32 %s104, 1
          %s354 = scalar_lea.sflag [#allocation4], %s353
          %s355 = sand.u32 %s104, 1
          %s356 = smul.addr %s355, 16
          %s357 = scalar_lea.vmem [#allocation7], %s356
          %359 = dma.done %s354, 256
        $region56: #{tpu_custom_call.1} parent=51 // pred_fallthru
          _
        // Predicated region
        $region57: #{tpu_custom_call.1} parent=51 // pred_check
          %p360 = pneg %p145
        $region58: #{tpu_custom_call.1} parent=51 // pred_check_branch
          %362 = sbr.rel (%p360) target = $region60
        $region59: #{tpu_custom_call.1} parent=51 // pred_region
          %s363 = sand.u32 %s130, 1
          %s364 = scalar_lea.sflag [#allocation9], %s363
          %s365 = sand.u32 %s130, 1
          %s366 = smul.addr %s365, 16
          %s367 = scalar_lea.vmem [#allocation8], %s366
          %369 = dma.done %s364, 256
        $region60: #{tpu_custom_call.1} parent=51 // pred_fallthru
          _
      $region52: #{tpu_custom_call.1} parent=5 // pred_fallthru
        _
    $region6: #{tpu_custom_call.1} parent=1 // loop_footer
      %s26 = sadd.s32 1, %s22
    $region7: #{tpu_custom_call.1} parent=1 // loop_footer_branch
      %21 = sbr.rel target = $region3
    $region8: #{tpu_custom_call.1} parent=1 // loop_exit
      _
    %370 = vsyncpa [#allocation3], 1
    %s371 = scalar_lea.sflag [#allocation3], 1
    %372 = vsyncpa %s371, 1
    %373 = vsyncpa [#allocation6], 1
    %s374 = scalar_lea.sflag [#allocation6], 1
    %375 = vsyncpa %s374, 1
    %376 = vsyncpa [#allocation4], 1
    %s377 = scalar_lea.sflag [#allocation4], 1
    %378 = vsyncpa %s377, 1
    %379 = vsyncpa [#allocation9], 1
    %s380 = scalar_lea.sflag [#allocation9], 1
    %381 = vsyncpa %s380, 1

</llo_original>
